<compile_context>
chip_gen: v5e
topology: v5e:2x2
jax: 0.10.0
libtpu: 0.0.40
codegen_flags: <defaults>
</compile_context>

<pallas_src>
import math

import jax
import jax.numpy as jnp
from jax import lax
from jax.experimental import pallas as pl
from jax.experimental.pallas import tpu as pltpu

_EPS = 1e-5
_LANES = 128
_DEFAULT_BLOCK_BYTES = 4 * 1024 * 1024     # ~4 MiB blocks
_VMEM_LIMIT_BYTES = 48 * 1024 * 1024       # <= v7x 64 MiB physical, << v5e/v6e 128 MiB
_MIN_GRID_STEPS = 4                        # keep both v7x TensorCores busy


def _ln_general_kernel(x_ref, wb_ref, o_ref):
    """LayerNorm rows of width C >= 128 (or C that cannot pack into 128 lanes)."""
    x = x_ref[...].astype(jnp.float32)
    mu = jnp.mean(x, axis=-1, keepdims=True)
    xc = x - mu
    var = jnp.mean(xc * xc, axis=-1, keepdims=True)   # biased (unbiased=False)
    inv = lax.rsqrt(var + _EPS)
    wb = wb_ref[...].astype(jnp.float32)
    o_ref[...] = (xc * (inv * wb[0:1, :]) + wb[1:2, :]).astype(o_ref.dtype)


def _ln_packed_kernel(x_ref, wb_ref, s_ref, o_ref):
    """Lane-dense path for C < 128: each 128-wide lane row holds k = 128//C rows.

    Segmented mean/var are computed on the otherwise-idle MXU with a bf16
    block-diagonal averaging matrix (entries 1/C, exact in bf16).  The f32
    operand is split hi/lo into two exact bf16 pieces (error-compensated), so
    each statistic costs two single-pass bf16 matmuls instead of one
    precision=HIGHEST f32 matmul (~3x less MXU work; keeps v5e HBM-bound).
    """
    x = x_ref[...].astype(jnp.float32)
    s = s_ref[...]                       # (128, 128) bf16, 1/C within a segment

    def seg_mean(v):
        hi = v.astype(jnp.bfloat16)
        lo = (v - hi.astype(jnp.float32)).astype(jnp.bfloat16)
        return (jnp.dot(hi, s, preferred_element_type=jnp.float32)
                + jnp.dot(lo, s, preferred_element_type=jnp.float32))

    mu = seg_mean(x)
    xc = x - mu
    var = seg_mean(xc * xc)              # biased variance
    inv = lax.rsqrt(var + _EPS)
    wb = wb_ref[...].astype(jnp.float32)
    o_ref[...] = (xc * (inv * wb[0:1, :]) + wb[1:2, :]).astype(o_ref.dtype)


def _sublanes_for(dtype):
    # Packed sublane count: 8 for 4-byte, 16 for 2-byte, 32 for 1-byte dtypes.
    return max(8, 32 // jnp.dtype(dtype).itemsize)


def _pick_tile_rows(rows, row_work_bytes, block_bytes, sublanes,
                    min_steps=_MIN_GRID_STEPS):
    """Largest row tile ~block_bytes, sublane aligned, >= min_steps grid steps."""
    if rows <= sublanes:
        return rows
    tr = max(1, block_bytes // max(1, row_work_bytes))
    tr = max(sublanes, (tr // sublanes) * sublanes)
    # Cap so the (parallel) grid has at least min_steps steps when possible,
    # so v7x's two TensorCores both get work (no effect on single-TC v5e/v6e).
    cap = pl.cdiv(rows, min_steps)
    cap = max(sublanes, pl.cdiv(cap, sublanes) * sublanes)
    tr = min(tr, cap)
    return rows if tr >= rows else tr


def _ln_rows_jax(x2, weight, bias):
    """Plain-JAX fallback for a tiny ragged tail (< k rows)."""
    xf = x2.astype(jnp.float32)
    mu = jnp.mean(xf, axis=-1, keepdims=True)
    xc = xf - mu
    var = jnp.mean(xc * xc, axis=-1, keepdims=True)
    out = xc * lax.rsqrt(var + _EPS) * weight.astype(jnp.float32) \
        + bias.astype(jnp.float32)
    return out.astype(x2.dtype)


def withbias_layernorm(x, weight, bias, *, block_bytes=_DEFAULT_BLOCK_BYTES):
    """LayerNorm over last dim (biased var, eps=1e-5) + affine; matches
    PyTorch WithBias_LayerNorm.forward. x: (..., C); weight/bias: (C,)."""
    orig_shape = x.shape
    C = orig_shape[-1]
    rows = math.prod(orig_shape[:-1]) if len(orig_shape) > 1 else 1
    x2 = x.reshape(rows, C)
    weight = weight.reshape(-1)
    bias = bias.reshape(-1)
    dtype_bytes = jnp.dtype(x.dtype).itemsize
    # Size blocks by the f32 working set (kernel upcasts), not input dtype bytes.
    work_bytes = max(4, dtype_bytes)
    sublanes = _sublanes_for(x.dtype)

    cparams = pltpu.CompilerParams(
        dimension_semantics=("parallel",),
        vmem_limit_bytes=_VMEM_LIMIT_BYTES,
    )
    cost = pl.CostEstimate(
        flops=10 * rows * C,
        transcendentals=rows,
        bytes_accessed=2 * rows * C * dtype_bytes,
    )

    # Lane-dense packing when C < 128 and C divides 128 (free contiguous reshape).
    k = _LANES // C if (C < _LANES and _LANES % C == 0) else 1

    if k > 1 and rows >= k:
        rows_main = (rows // k) * k
        lane_w = k * C                       # == 128
        rp = rows_main // k
        xk = x2[:rows_main].reshape(rp, lane_w)
        wb = jnp.stack([jnp.tile(weight, k), jnp.tile(bias, k)], axis=0)
        seg = jnp.arange(lane_w, dtype=jnp.int32) // C
        # 1/C is exact in bf16 because 128 % C == 0 -> C is a power of two.
        seg_mat = ((seg[:, None] == seg[None, :]).astype(jnp.float32)
                   / float(C)).astype(jnp.bfloat16)

        tile_rows = _pick_tile_rows(rp, lane_w * work_bytes, block_bytes, sublanes)
        grid = (pl.cdiv(rp, tile_rows),)
        out_main = pl.pallas_call(
            _ln_packed_kernel,
            out_shape=jax.ShapeDtypeStruct((rp, lane_w), x.dtype),
            grid_spec=pltpu.PrefetchScalarGridSpec(
                num_scalar_prefetch=0,
                grid=grid,
                in_specs=[
                    pl.BlockSpec((tile_rows, lane_w), lambda i: (i, 0)),
                    # Constant-index blocks are revisited (fetched once), so the
                    # small wb / seg_mat tiles are not re-DMA'd every grid step.
                    pl.BlockSpec((2, lane_w), lambda i: (0, 0)),
                    pl.BlockSpec((lane_w, lane_w), lambda i: (0, 0)),
                ],
                out_specs=pl.BlockSpec((tile_rows, lane_w), lambda i: (i, 0)),
            ),
            compiler_params=cparams,
            cost_estimate=cost,
        )(xk, wb, seg_mat)
        out = out_main.reshape(rows_main, C)
        if rows_main != rows:
            # Ragged tail (< k rows): tiny, handled in plain JAX instead of a
            # masked-store general-path kernel; never jnp.pad the whole array.
            tail = _ln_rows_jax(x2[rows_main:], weight, bias)
            out = jnp.concatenate([out, tail], axis=0)
        return out.reshape(orig_shape)

    # General path (C >= 128, C not packing into 128 lanes, or rows < k).
    # NOTE: jnp.mean(axis=-1) is an XLU cross-lane reduce; only move it to the
    # MXU (x @ avg_mat) if a bundle dump shows the XLU binding for large C.
    wb = jnp.stack([weight, bias], axis=0)
    tile_rows = _pick_tile_rows(rows, C * work_bytes, block_bytes, sublanes)
    grid = (pl.cdiv(rows, tile_rows),)
    out = pl.pallas_call(
        _ln_general_kernel,
        out_shape=jax.ShapeDtypeStruct((rows, C), x.dtype),
        grid_spec=pltpu.PrefetchScalarGridSpec(
            num_scalar_prefetch=0,
            grid=grid,
            in_specs=[
                pl.BlockSpec((tile_rows, C), lambda i: (i, 0)),
                pl.BlockSpec((2, C), lambda i: (0, 0)),
            ],
            out_specs=pl.BlockSpec((tile_rows, C), lambda i: (i, 0)),
        ),
        compiler_params=cparams,
        cost_estimate=cost,
    )(x2, wb)
    return out.reshape(orig_shape)


def _reference(x, weight, bias):
    mu = jnp.mean(x, axis=-1, keepdims=True)
    sigma = jnp.mean((x - mu) ** 2, axis=-1, keepdims=True)
    return (x - mu) / jnp.sqrt(sigma + _EPS) * weight + bias


if __name__ == "__main__":
    key = jax.random.PRNGKey(0)
    k1, k2, k3, k4, k5 = jax.random.split(key, 5)

    # Case 1: C=32 -> lane-dense packed path (k=4), default module init
    # (weight=ones, bias=zeros).  tile_rows is capped so the grid has 4 steps.
    B, N, C = 2, 64, 32
    x1 = jax.random.normal(k1, (B, N, C), dtype=jnp.float32)
    w1 = jnp.ones((C,), jnp.float32)
    b1 = jnp.zeros((C,), jnp.float32)
    o1 = jax.block_until_ready(withbias_layernorm(x1, w1, b1))
    r1 = _reference(x1, w1, b1)
    assert o1.shape == x1.shape and o1.dtype == x1.dtype
    assert jnp.allclose(o1, r1, atol=1e-5, rtol=1e-5)

    # Case 2: C=128 -> general path; small block size forces a partial trailing
    # tile (exercises the pl.cdiv grid / masked-write path, no wrapper pad).
    B2, N2, C2 = 3, 50, 128
    x2 = jax.random.normal(k2, (B2, N2, C2), dtype=jnp.float32)
    w2 = 1.0 + 0.1 * jax.random.normal(k3, (C2,), dtype=jnp.float32)
    b2 = 0.1 * jnp.ones((C2,), jnp.float32)
    o2 = jax.block_until_ready(withbias_layernorm(x2, w2, b2, block_bytes=32 * 1024))
    r2 = _reference(x2, w2, b2)
    assert jnp.allclose(o2, r2, atol=1e-5, rtol=1e-5)

    # Case 3: packed path with non-trivial affine params and a partial tile.
    B3, N3, C3 = 2, 100, 32
    x3 = jax.random.normal(k4, (B3, N3, C3), dtype=jnp.float32)
    w3 = 1.0 + 0.05 * jnp.arange(C3, dtype=jnp.float32)
    b3 = -0.25 * jnp.ones((C3,), jnp.float32)
    o3 = jax.block_until_ready(withbias_layernorm(x3, w3, b3, block_bytes=16 * 1024))
    r3 = _reference(x3, w3, b3)
    assert jnp.allclose(o3, r3, atol=1e-5, rtol=1e-5)

    # Case 4: packed path with rows % k != 0 (ragged tail handled in plain JAX
    # on the <k remainder rows; no full-array fallback to the masked-store path).
    B4, N4, C4 = 1, 33, 32
    x4 = jax.random.normal(k5, (B4, N4, C4), dtype=jnp.float32)
    w4 = 1.0 + 0.02 * jnp.arange(C4, dtype=jnp.float32)
    b4 = 0.05 * jnp.ones((C4,), jnp.float32)
    o4 = jax.block_until_ready(withbias_layernorm(x4, w4, b4))
    r4 = _reference(x4, w4, b4)
    assert o4.shape == x4.shape
    assert jnp.allclose(o4, r4, atol=1e-5, rtol=1e-5)

    print("KERNEL_OK")
</pallas_src>

<mosaic_0001>
module attributes {stable_mosaic.version = 11 : i64} {
  func.func @_ln_packed_kernel(%arg0: i32, %arg1: memref<8x128xf32, #tpu.memory_space<vmem>>, %arg2: memref<2x128xf32, #tpu.memory_space<vmem>>, %arg3: memref<128x128xbf16, #tpu.memory_space<vmem>>, %arg4: memref<8x128xf32, #tpu.memory_space<vmem>>) attributes {dimension_semantics = [#tpu.dimension_semantics<parallel>], iteration_bounds = array<i64: 4>, scalar_prefetch = 0 : i64, scratch_operands = 0 : i64, tpu.core_type = #tpu.core_type<tc>, window_params = [{transform_indices = @transform_0, window_bounds = array<i64: 8, 128>}, {pipeline_mode = #tpu.pipeline_mode<synchronous>, transform_indices = @transform_1, window_bounds = array<i64: 2, 128>}, {pipeline_mode = #tpu.pipeline_mode<synchronous>, transform_indices = @transform_2, window_bounds = array<i64: 128, 128>}, {transform_indices = @transform_3, window_bounds = array<i64: 8, 128>}]} {
    %c0 = arith.constant 0 : index
    %c0_0 = arith.constant 0 : index
    %0 = vector.load %arg1[%c0, %c0_0] : memref<8x128xf32, #tpu.memory_space<vmem>>, vector<8x128xf32>
    %c0_1 = arith.constant 0 : index
    %c0_2 = arith.constant 0 : index
    %1 = vector.load %arg3[%c0_1, %c0_2] : memref<128x128xbf16, #tpu.memory_space<vmem>>, vector<128x128xbf16>
    %2 = arith.truncf %0 : vector<8x128xf32> to vector<8x128xbf16>
    %3 = arith.extf %2 : vector<8x128xbf16> to vector<8x128xf32>
    %4 = arith.subf %0, %3 : vector<8x128xf32>
    %5 = arith.truncf %4 : vector<8x128xf32> to vector<8x128xbf16>
    %cst = arith.constant dense<0.000000e+00> : vector<8x128xf32>
    %6 = tpu.matmul %2, %1, %cst {dimension_numbers = #tpu.dot_dimension_numbers<[1], [0], [0], [1], [0, 0, 1, 1], [], []>} : vector<8x128xbf16>, vector<128x128xbf16>, vector<8x128xf32> -> vector<8x128xf32>
    %cst_3 = arith.constant dense<0.000000e+00> : vector<8x128xf32>
    %7 = tpu.matmul %5, %1, %cst_3 {dimension_numbers = #tpu.dot_dimension_numbers<[1], [0], [0], [1], [0, 0, 1, 1], [], []>} : vector<8x128xbf16>, vector<128x128xbf16>, vector<8x128xf32> -> vector<8x128xf32>
    %8 = arith.addf %6, %7 : vector<8x128xf32>
    %9 = arith.subf %0, %8 : vector<8x128xf32>
    %10 = arith.mulf %9, %9 : vector<8x128xf32>
    %11 = arith.truncf %10 : vector<8x128xf32> to vector<8x128xbf16>
    %12 = arith.extf %11 : vector<8x128xbf16> to vector<8x128xf32>
    %13 = arith.subf %10, %12 : vector<8x128xf32>
    %14 = arith.truncf %13 : vector<8x128xf32> to vector<8x128xbf16>
    %cst_4 = arith.constant dense<0.000000e+00> : vector<8x128xf32>
    %15 = tpu.matmul %11, %1, %cst_4 {dimension_numbers = #tpu.dot_dimension_numbers<[1], [0], [0], [1], [0, 0, 1, 1], [], []>} : vector<8x128xbf16>, vector<128x128xbf16>, vector<8x128xf32> -> vector<8x128xf32>
    %cst_5 = arith.constant dense<0.000000e+00> : vector<8x128xf32>
    %16 = tpu.matmul %14, %1, %cst_5 {dimension_numbers = #tpu.dot_dimension_numbers<[1], [0], [0], [1], [0, 0, 1, 1], [], []>} : vector<8x128xbf16>, vector<128x128xbf16>, vector<8x128xf32> -> vector<8x128xf32>
    %17 = arith.addf %15, %16 : vector<8x128xf32>
    %cst_6 = arith.constant 9.99999974E-6 : f32
    %18 = vector.broadcast %cst_6 : f32 to vector<8x128xf32>
    %19 = arith.addf %17, %18 : vector<8x128xf32>
    %20 = math.rsqrt %19 : vector<8x128xf32>
    %c0_7 = arith.constant 0 : index
    %c0_8 = arith.constant 0 : index
    %21 = vector.load %arg2[%c0_7, %c0_8] : memref<2x128xf32, #tpu.memory_space<vmem>>, vector<2x128xf32>
    %22 = vector.extract_strided_slice %21 {offsets = [0, 0], sizes = [1, 128], strides = [1, 1]} : vector<2x128xf32> to vector<1x128xf32>
    %23 = vector.broadcast %22 : vector<1x128xf32> to vector<8x128xf32>
    %24 = arith.mulf %20, %23 : vector<8x128xf32>
    %25 = arith.mulf %9, %24 : vector<8x128xf32>
    %26 = vector.extract_strided_slice %21 {offsets = [1, 0], sizes = [1, 128], strides = [1, 1]} : vector<2x128xf32> to vector<1x128xf32>
    %27 = vector.broadcast %26 : vector<1x128xf32> to vector<8x128xf32>
    %28 = arith.addf %25, %27 : vector<8x128xf32>
    %c0_9 = arith.constant 0 : index
    %c0_10 = arith.constant 0 : index
    %29 = vector.load %arg4[%c0_9, %c0_10] : memref<8x128xf32, #tpu.memory_space<vmem>>, vector<8x128xf32>
    tpu.vector_store %arg4[%c0_9, %c0_10], %28 {strides = array<i32>} : memref<8x128xf32, #tpu.memory_space<vmem>>, vector<8x128xf32>,
    return
  }
  func.func @transform_0(%arg0: i32) -> (i32, i32) {
    %c0_i32 = arith.constant 0 : i32
    %c0_i32_0 = arith.constant 0 : i32
    return %arg0, %c0_i32 : i32, i32
  }
  func.func @transform_1(%arg0: i32) -> (i32, i32) {
    %c0_i32 = arith.constant 0 : i32
    %c0_i32_0 = arith.constant 0 : i32
    %c0_i32_1 = arith.constant 0 : i32
    return %c0_i32, %c0_i32_0 : i32, i32
  }
  func.func @transform_2(%arg0: i32) -> (i32, i32) {
    %c0_i32 = arith.constant 0 : i32
    %c0_i32_0 = arith.constant 0 : i32
    %c0_i32_1 = arith.constant 0 : i32
    return %c0_i32, %c0_i32_0 : i32, i32
  }
  func.func @transform_3(%arg0: i32) -> (i32, i32) {
    %c0_i32 = arith.constant 0 : i32
    %c0_i32_0 = arith.constant 0 : i32
    return %arg0, %c0_i32 : i32, i32
  }
}

</mosaic_0001>

<llo_original>
// kernel: tpu_custom_call.1
$region0: #{tpu_custom_call.1}
  #allocation0 [shape = 'u32[]', space=smem, size = 0x4, offset = 0x4, fixed_abs, tag = 'smem constant byte address 0x4 - core index']
  #allocation1 [shape = 'u32[72,128]{1,0:T(1,128)}', space=vmem, size = 0x9000, scoped, tag = 'internal scratch']
  %s0 = inlined_call_operand.hbm [shape: f32[32,128], index: 0, kind: input, shape index: {}]
  %s1 = inlined_call_operand.hbm [shape: f32[2,128], index: 1, kind: input, shape index: {}]
  %s2 = inlined_call_operand.hbm [shape: bf16[128,128], index: 2, kind: input, shape index: {}]
  %s3 = inlined_call_operand.hbm [shape: f32[32,128], index: 3, kind: output, shape index: {}]
  %s4 = sld [smem:[#allocation0]]
  $region57: #{tpu_custom_call.1} parent=0
    _
  %s6 = ssub.s32 1, %s4
  %s7 = scalar_select 0, %s6, %s4
  $region1: #{tpu_custom_call.1} parent=0
    #allocation2 [shape = 'u8[8192]{0}', space=vmem, size = 0x2000, scoped, tag = 'input window, operand 0']
    #allocation3 [shape = 's32[2]{0}', space=sflag, size = 0x8, scoped, tag = 'scoped memory for tpu_custom_call.1']
    #allocation4 [shape = 's32[2]{0}', space=sflag, size = 0x8, scoped, tag = 'scoped memory for tpu_custom_call.1']
    #allocation5 [shape = 'u8[1024]{0}', space=vmem, size = 0x400, scoped, tag = 'input window, operand 1, single buffered']
    #allocation6 [shape = 's32[1]{0}', space=sflag, size = 0x4, scoped, tag = 'scoped memory for tpu_custom_call.1']
    #allocation7 [shape = 'u8[32768]{0}', space=vmem, size = 0x8000, scoped, tag = 'input window, operand 2, single buffered']
    #allocation8 [shape = 'u8[8192]{0}', space=vmem, size = 0x2000, scoped, tag = 'output window, operand 0']
    %8 = vsyncpa [#allocation3], 0
    %s9 = scalar_lea.sflag [#allocation3], 1
    %10 = vsyncpa %s9, 0
    %11 = vsyncpa [#allocation6], 0
    %12 = vsyncpa [#allocation4], 0
    %s13 = scalar_lea.sflag [#allocation4], 1
    %14 = vsyncpa %s13, 0
    loop: start=0, step=1, limit=6
    $region2: #{tpu_custom_call.1} parent=1 // loop_pre_header
      _
    $region3: #{tpu_custom_call.1} parent=1 // loop_header
      %s16 = sphi 0, %s20
      %p17 = scmp.ge.s32.totalorder %s16, 6
      %s26 = sphi 0, %s28
      %s29 = sphi 0, %s26
      %s30 = sphi 0, %s29
      %s46 = sphi 0, %s30
      %s50 = sphi 0, %s50
      %s52 = sphi 0, %s50
      %s53 = sphi 0, %s52
      %s67 = sphi 0, %s53
      %s71 = sphi 0, %s71
      %s73 = sphi 0, %s71
      %s74 = sphi 0, %s73
      %s88 = sphi 0, %s74
      %s94 = sphi 0, %s96
      %s97 = sphi 0, %s94
      %s98 = sphi 0, %s97
      %s114 = sphi 0, %s98
    $region4: #{tpu_custom_call.1} parent=1 // loop_header_branch
      %19 = sbr.rel (%p17) target = $region8
    $region5: #{tpu_custom_call.1} parent=1 // loop_body
      %s21 = ssub.s32 %s16, 1
      %s22 = ssub.s32 %s16, 2
      %s23 = sadd.s32 %s16, 1
      %s24 = ssub.s32 %s16, %s23
      %p25 = scmp.eq.s32.totalorder %s24, 0
      %s27 = sadd.s32 %s26, 1
      %s28 = scalar_select %p25, %s26, %s27
      %p31 = pneg %p25
      %p32 = scmp.eq.s32.totalorder %s16, 3
      %p33 = por %p31, %p32
      %p34 = scmp.ne.s32.totalorder %s26, %s29
      %p35 = scmp.eq.s32.totalorder %s16, 0
      %p36 = por %p34, %p35
      %p37 = scmp.ne.s32.totalorder %s26, %s29
      %p38 = scmp.eq.s32.totalorder %s21, 3
      %p39 = por %p37, %p38
      %p40 = scmp.ne.s32.totalorder %s29, %s30
      %p41 = scmp.eq.s32.totalorder %s21, 0
      %p42 = por %p40, %p41
      %p43 = scmp.ne.s32.totalorder %s29, %s30
      %p44 = scmp.eq.s32.totalorder %s22, 3
      %p45 = por %p43, %p44
      %p47 = scmp.ne.s32.totalorder %s30, %s46
      %p48 = scmp.eq.s32.totalorder %s22, 0
      %p49 = por %p47, %p48
      %s51 = sadd.s32 %s50, 1
      %p54 = scmp.eq.s32.totalorder %s16, 3
      %p55 = scmp.ne.s32.totalorder %s50, %s52
      %p56 = scmp.eq.s32.totalorder %s16, 0
      %p57 = por %p55, %p56
      %p58 = scmp.ne.s32.totalorder %s50, %s52
      %p59 = scmp.eq.s32.totalorder %s21, 3
      %p60 = por %p58, %p59
      %p61 = scmp.ne.s32.totalorder %s52, %s53
      %p62 = scmp.eq.s32.totalorder %s21, 0
      %p63 = por %p61, %p62
      %p64 = scmp.ne.s32.totalorder %s52, %s53
      %p65 = scmp.eq.s32.totalorder %s22, 3
      %p66 = por %p64, %p65
      %p68 = scmp.ne.s32.totalorder %s53, %s67
      %p69 = scmp.eq.s32.totalorder %s22, 0
      %p70 = por %p68, %p69
      %s72 = sadd.s32 %s71, 1
      %p75 = scmp.eq.s32.totalorder %s16, 3
      %p76 = scmp.ne.s32.totalorder %s71, %s73
      %p77 = scmp.eq.s32.totalorder %s16, 0
      %p78 = por %p76, %p77
      %p79 = scmp.ne.s32.totalorder %s71, %s73
      %p80 = scmp.eq.s32.totalorder %s21, 3
      %p81 = por %p79, %p80
      %p82 = scmp.ne.s32.totalorder %s73, %s74
      %p83 = scmp.eq.s32.totalorder %s21, 0
      %p84 = por %p82, %p83
      %p85 = scmp.ne.s32.totalorder %s73, %s74
      %p86 = scmp.eq.s32.totalorder %s22, 3
      %p87 = por %p85, %p86
      %p89 = scmp.ne.s32.totalorder %s74, %s88
      %p90 = scmp.eq.s32.totalorder %s22, 0
      %p91 = por %p89, %p90
      %s92 = ssub.s32 %s16, %s23
      %p93 = scmp.eq.s32.totalorder %s92, 0
      %s95 = sadd.s32 %s94, 1
      %s96 = scalar_select %p93, %s94, %s95
      %p99 = pneg %p93
      %p100 = scmp.eq.s32.totalorder %s16, 3
      %p101 = por %p99, %p100
      %p102 = scmp.ne.s32.totalorder %s94, %s97
      %p103 = scmp.eq.s32.totalorder %s16, 0
      %p104 = por %p102, %p103
      %p105 = scmp.ne.s32.totalorder %s94, %s97
      %p106 = scmp.eq.s32.totalorder %s21, 3
      %p107 = por %p105, %p106
      %p108 = scmp.ne.s32.totalorder %s97, %s98
      %p109 = scmp.eq.s32.totalorder %s21, 0
      %p110 = por %p108, %p109
      %p111 = scmp.ne.s32.totalorder %s97, %s98
      %p112 = scmp.eq.s32.totalorder %s22, 3
      %p113 = por %p111, %p112
      %p115 = scmp.ne.s32.totalorder %s98, %s114
      %p116 = scmp.eq.s32.totalorder %s22, 0
      %p117 = por %p115, %p116
      %p118 = scmp.le.s32.totalorder 1, %s16
      %p119 = scmp.lt.s32.totalorder %s16, 5
      %p120 = pnand %p118, %p119
      %p121 = pneg %p120
      // Predicated region
      $region9: #{tpu_custom_call.1} parent=5 // pred_check
        _
      $region10: #{tpu_custom_call.1} parent=5 // pred_check_branch
        %123 = sbr.rel (%p120) target = $region12
      $region11: #{tpu_custom_call.1} parent=5 // pred_region
        %s124 = ssub.s32 %s16, 1
        // Predicated region
        $region13: #{tpu_custom_call.1} parent=11 // pred_check
          %p125 = pneg %p63
        $region14: #{tpu_custom_call.1} parent=11 // pred_check_branch
          %127 = sbr.rel (%p125) target = $region16
        $region15: #{tpu_custom_call.1} parent=11 // pred_region
          %129 = vsyncadd [#allocation6], 0
          %s131 = sshll.u32 %s1, 4
          %s132 = int_to_ptr.hbm [resolvable:$true] %s131
          %s133 = sshll.u32 [#allocation5], 4
          %s134 = int_to_ptr.vmem [resolvable:$true] %s133
          %136 = dma.hbm_to_vmem [thread:$0]  %s132, 32, %s134, [#allocation6]
        $region16: #{tpu_custom_call.1} parent=11 // pred_fallthru
          _
        // Predicated region
        $region17: #{tpu_custom_call.1} parent=11 // pred_check
          %p137 = pneg %p84
        $region18: #{tpu_custom_call.1} parent=11 // pred_check_branch
          %139 = sbr.rel (%p137) target = $region20
        $region19: #{tpu_custom_call.1} parent=11 // pred_region
          %141 = vsyncadd [#allocation6], 0
          %s142 = sshll.u32 %s2, 4
          %s143 = int_to_ptr.hbm [resolvable:$true] %s142
          %s144 = sshll.u32 [#allocation7], 4
          %s145 = int_to_ptr.vmem [resolvable:$true] %s144
          %150 = dma.hbm_to_vmem [thread:$0]  %s143, 1024, %s145, [#allocation6], 64, 64, 4
        $region20: #{tpu_custom_call.1} parent=11 // pred_fallthru
          _
      $region12: #{tpu_custom_call.1} parent=5 // pred_fallthru
        _
      %p151 = scmp.lt.s32.totalorder %s16, 4
      // Predicated region
      $region21: #{tpu_custom_call.1} parent=5 // pred_check
        %p152 = pneg %p151
      $region22: #{tpu_custom_call.1} parent=5 // pred_check_branch
        %154 = sbr.rel (%p152) target = $region24
      $region23: #{tpu_custom_call.1} parent=5 // pred_region
        // Predicated region
        $region25: #{tpu_custom_call.1} parent=23 // pred_check
          %p155 = pneg %p36
        $region26: #{tpu_custom_call.1} parent=23 // pred_check_branch
          %157 = sbr.rel (%p155) target = $region28
        $region27: #{tpu_custom_call.1} parent=23 // pred_region
          %s158 = sand.u32 %s26, 1
          %s159 = scalar_lea.sflag [#allocation3], %s158
          %s160 = sand.u32 %s26, 1
          %s161 = smul.addr %s160, 8
          %s162 = scalar_lea.vmem [#allocation2], %s161
          %164 = vsyncadd %s159, 0
          %s165 = smul.addr %s16, 8
          %s166 = scalar_lea.hbm %s0, %s165
          %s168 = sshll.u32 %s166, 4
          %s169 = int_to_ptr.hbm [resolvable:$true] %s168
          %s170 = sshll.u32 %s162, 4
          %s171 = int_to_ptr.vmem [resolvable:$true] %s170
          %173 = dma.hbm_to_vmem [thread:$0]  %s169, 128, %s171, %s159
        $region28: #{tpu_custom_call.1} parent=23 // pred_fallthru
          _
      $region24: #{tpu_custom_call.1} parent=5 // pred_fallthru
        _
      %p174 = scmp.le.s32.totalorder 1, %s16
      %p175 = scmp.lt.s32.totalorder %s16, 5
      %p176 = pnand %p174, %p175
      %p177 = pneg %p176
      // Predicated region
      $region29: #{tpu_custom_call.1} parent=5 // pred_check
        _
      $region30: #{tpu_custom_call.1} parent=5 // pred_check_branch
        %179 = sbr.rel (%p176) target = $region32
      $region31: #{tpu_custom_call.1} parent=5 // pred_region
        %s180 = ssub.s32 %s16, 1
        %s181 = sand.u32 %s29, 1
        %s182 = scalar_lea.sflag [#allocation3], %s181
        %s183 = sand.u32 %s29, 1
        %s184 = smul.addr %s183, 8
        %s185 = scalar_lea.vmem [#allocation2], %s184
        // Predicated region
        $region33: #{tpu_custom_call.1} parent=31 // pred_check
          %p186 = pneg %p42
        $region34: #{tpu_custom_call.1} parent=31 // pred_check_branch
          %188 = sbr.rel (%p186) target = $region36
        $region35: #{tpu_custom_call.1} parent=31 // pred_region
          %190 = dma.done %s182, 128
        $region36: #{tpu_custom_call.1} parent=31 // pred_fallthru
          _
        // Predicated region
        $region37: #{tpu_custom_call.1} parent=31 // pred_check
          %p191 = pneg %p63
        $region38: #{tpu_custom_call.1} parent=31 // pred_check_branch
          %193 = sbr.rel (%p191) target = $region40
        $region39: #{tpu_custom_call.1} parent=31 // pred_region
          %195 = dma.done [#allocation6], 32
        $region40: #{tpu_custom_call.1} parent=31 // pred_fallthru
          _
        // Predicated region
        $region41: #{tpu_custom_call.1} parent=31 // pred_check
          %p196 = pneg %p84
        $region42: #{tpu_custom_call.1} parent=31 // pred_check_branch
          %198 = sbr.rel (%p196) target = $region44
        $region43: #{tpu_custom_call.1} parent=31 // pred_region
          %200 = dma.done [#allocation6], 1024
        $region44: #{tpu_custom_call.1} parent=31 // pred_fallthru
          _
        %s201 = sand.u32 %s29, 1
        %s202 = scalar_lea.sflag [#allocation3], %s201
        %s203 = sand.u32 %s29, 1
        %s204 = smul.addr %s203, 8
        %s205 = scalar_lea.vmem [#allocation2], %s204
        %p206 = pneg %p42
        %p207 = pneg %p39
        %p208 = pneg %p63
        %p209 = pneg %p60
        %p210 = pneg %p84
        %p211 = pneg %p81
        %p212 = pneg %p110
        %p213 = pneg %p107
        %s214 = sand.u32 %s97, 1
        %s215 = scalar_lea.sflag [#allocation4], %s214
        %s216 = sand.u32 %s97, 1
        %s217 = smul.addr %s216, 8
        %s218 = scalar_lea.vmem [#allocation8], %s217
        %v219 = vld [vmem:[%s185] sm:$0xff]
        %v220 = vld [vmem:[#allocation7] sm:$0xf]
        %v221 = vld [vmem:[#allocation7 + $0x4] sm:$0xf]
        %v222 = vld [vmem:[#allocation7 + $0x8] sm:$0xf]
        %v223 = vld [vmem:[#allocation7 + $0xc] sm:$0xf]
        %v224 = vld [vmem:[#allocation7 + $0x10] sm:$0xf]
        %v225 = vld [vmem:[#allocation7 + $0x14] sm:$0xf]
        %v226 = vld [vmem:[#allocation7 + $0x18] sm:$0xf]
        %v227 = vld [vmem:[#allocation7 + $0x1c] sm:$0xf]
        %v228 = vld [vmem:[#allocation7 + $0x20] sm:$0xf]
        %v229 = vld [vmem:[#allocation7 + $0x24] sm:$0xf]
        %v230 = vld [vmem:[#allocation7 + $0x28] sm:$0xf]
        %v231 = vld [vmem:[#allocation7 + $0x2c] sm:$0xf]
        %v232 = vld [vmem:[#allocation7 + $0x30] sm:$0xf]
        %v233 = vld [vmem:[#allocation7 + $0x34] sm:$0xf]
        %v234 = vld [vmem:[#allocation7 + $0x38] sm:$0xf]
        %v235 = vld [vmem:[#allocation7 + $0x3c] sm:$0xf]
        %v236 = vpack.c.bf16 %v219, %v219
        %v237 = vunpack.c.l.bf16 %v236
        %v238 = vsub.f32 %v219, %v237
        %v239 = vpack.c.bf16 %v238, %v238
        %v256 = vunpack.c.l.b16 %v220
        %v257 = vunpack.c.l.b16 %v221
        %v258 = vunpack.c.l.b16 %v222
        %v259 = vunpack.c.l.b16 %v223
        %v260 = vunpack.c.l.b16 %v224
        %v261 = vunpack.c.l.b16 %v225
        %v262 = vunpack.c.l.b16 %v226
        %v263 = vunpack.c.l.b16 %v227
        %v264 = vunpack.c.l.b16 %v228
        %v265 = vunpack.c.l.b16 %v229
        %v266 = vunpack.c.l.b16 %v230
        %v267 = vunpack.c.l.b16 %v231
        %v268 = vunpack.c.l.b16 %v232
        %v269 = vunpack.c.l.b16 %v233
        %v270 = vunpack.c.l.b16 %v234
        %v271 = vunpack.c.l.b16 %v235
        %v272 = vpack.c.b16 %v257, %v256
        %v273 = vpack.c.b16 %v259, %v258
        %v274 = vpack.c.b16 %v261, %v260
        %v275 = vpack.c.b16 %v263, %v262
        %v276 = vpack.c.b16 %v265, %v264
        %v277 = vpack.c.b16 %v267, %v266
        %v278 = vpack.c.b16 %v269, %v268
        %v279 = vpack.c.b16 %v271, %v270
        %288 = vmatpush.bf16.msra.mxu0 %v279
        %289 = vmatpush.bf16.msra.mxu0 %v278
        %290 = vmatpush.bf16.msra.mxu0 %v277
        %291 = vmatpush.bf16.msra.mxu0 %v276
        %292 = vmatpush.bf16.msra.mxu0 %v275
        %293 = vmatpush.bf16.msra.mxu0 %v274
        %294 = vmatpush.bf16.msra.mxu0 %v273
        %295 = vmatpush.bf16.msra.mxu0 %v272
        %296 = vmatmul.bf16.gmra.mxu0 %v239
        %v297 = vpop.f32.mrf.mxu0
        %v298 = vadd.f32 0.0, %v297
        %v299 = vpop.f32.mrf.mxu0
        %300 = vdwg.mxu0
        %301 = vmatpush.bf16.msra.mxu0 %v279
        %302 = vmatpush.bf16.msra.mxu0 %v278
        %303 = vmatpush.bf16.msra.mxu0 %v277
        %304 = vmatpush.bf16.msra.mxu0 %v276
        %305 = vmatpush.bf16.msra.mxu0 %v275
        %306 = vmatpush.bf16.msra.mxu0 %v274
        %307 = vmatpush.bf16.msra.mxu0 %v273
        %308 = vmatpush.bf16.msra.mxu0 %v272
        %309 = vmatmul.bf16.gmra.mxu0 %v236
        %v310 = vpop.f32.mrf.mxu0
        %v311 = vadd.f32 %v298, %v310
        %v312 = vpop.f32.mrf.mxu0
        %313 = vdwg.mxu0
        %v314 = vsub.f32 %v219, %v311
        %v315 = vmul.f32 %v314, %v314
        %v316 = vpack.c.bf16 %v315, %v315
        %v317 = vunpack.c.l.bf16 %v316
        %v318 = vsub.f32 %v315, %v317
        %v319 = vpack.c.bf16 %v318, %v318
        %320 = vmatpush.bf16.msra.mxu0 %v279
        %321 = vmatpush.bf16.msra.mxu0 %v278
        %322 = vmatpush.bf16.msra.mxu0 %v277
        %323 = vmatpush.bf16.msra.mxu0 %v276
        %324 = vmatpush.bf16.msra.mxu0 %v275
        %325 = vmatpush.bf16.msra.mxu0 %v274
        %326 = vmatpush.bf16.msra.mxu0 %v273
        %327 = vmatpush.bf16.msra.mxu0 %v272
        %328 = vmatmul.bf16.gmra.mxu0 %v319
        %v329 = vpop.f32.mrf.mxu0
        %v330 = vadd.f32 0.0, %v329
        %v331 = vpop.f32.mrf.mxu0
        %332 = vdwg.mxu0
        %333 = vmatpush.bf16.msra.mxu0 %v279
        %334 = vmatpush.bf16.msra.mxu0 %v278
        %335 = vmatpush.bf16.msra.mxu0 %v277
        %336 = vmatpush.bf16.msra.mxu0 %v276
        %337 = vmatpush.bf16.msra.mxu0 %v275
        %338 = vmatpush.bf16.msra.mxu0 %v274
        %339 = vmatpush.bf16.msra.mxu0 %v273
        %340 = vmatpush.bf16.msra.mxu0 %v272
        %341 = vmatmul.bf16.gmra.mxu0 %v316
        %v342 = vpop.f32.mrf.mxu0
        %v343 = vadd.f32 %v330, %v342
        %v344 = vpop.f32.mrf.mxu0
        %345 = vdwg.mxu0
        %v346 = vadd.f32 %v343, 1e-05
        %v347 = vrsqrt.pop %v346
        %v348 = vmul.f32 %v347, %v346
        %v349 = vmul.f32 %v348, %v347
        %v350 = vmul.f32 0.5, %v349
        %v351 = vsub.f32 1.5, %v350
        %v352 = vmul.f32 %v347, %v351
        %vm353 = vweird.f32 %v346
        %vm354 = vweird.f32 %v347
        %vm355 = vmor %vm353, %vm354
        %v356 = vsel %vm355, %v347, %v352
        %v357 = vld [vmem:[#allocation5] sm:$0x3]
        %v358 = vperm.slane %v357, 0
        %v359 = vmul.f32 %v356, %v358
        %v360 = vmul.f32 %v314, %v359
        %v361 = vperm.slane %v357, 1
        %v362 = vadd.f32 %v360, %v361
        %363 = vst [vmem:[%s218] sm:$0xff] %v362
        %s364 = sand.u32 %s97, 1
        %s365 = scalar_lea.sflag [#allocation4], %s364
        %s366 = sand.u32 %s97, 1
        %s367 = smul.addr %s366, 8
        %s368 = scalar_lea.vmem [#allocation8], %s367
        // Predicated region
        $region45: #{tpu_custom_call.1} parent=31 // pred_check
          %p369 = pneg %p107
        $region46: #{tpu_custom_call.1} parent=31 // pred_check_branch
          %371 = sbr.rel (%p369) target = $region48
        $region47: #{tpu_custom_call.1} parent=31 // pred_region
          %373 = vsyncadd %s365, 0
          %s374 = smul.addr %s21, 8
          %s375 = scalar_lea.hbm %s3, %s374
          %s377 = sshll.u32 %s368, 4
          %s378 = int_to_ptr.vmem [resolvable:$true] %s377
          %s379 = sshll.u32 %s375, 4
          %s380 = int_to_ptr.hbm [resolvable:$true] %s379
          %382 = dma.vmem_to_hbm [thread:$0]  %s378, 128, %s380, %s365
        $region48: #{tpu_custom_call.1} parent=31 // pred_fallthru
          _
      $region32: #{tpu_custom_call.1} parent=5 // pred_fallthru
        _
      %p383 = scmp.le.s32.totalorder 2, %s16
      // Predicated region
      $region49: #{tpu_custom_call.1} parent=5 // pred_check
        %p384 = pneg %p383
      $region50: #{tpu_custom_call.1} parent=5 // pred_check_branch
        %386 = sbr.rel (%p384) target = $region52
      $region51: #{tpu_custom_call.1} parent=5 // pred_region
        %s387 = ssub.s32 %s16, 2
        // Predicated region
        $region53: #{tpu_custom_call.1} parent=51 // pred_check
          %p388 = pneg %p113
        $region54: #{tpu_custom_call.1} parent=51 // pred_check_branch
          %390 = sbr.rel (%p388) target = $region56
        $region55: #{tpu_custom_call.1} parent=51 // pred_region
          %s391 = sand.u32 %s98, 1
          %s392 = scalar_lea.sflag [#allocation4], %s391
          %s393 = sand.u32 %s98, 1
          %s394 = smul.addr %s393, 8
          %s395 = scalar_lea.vmem [#allocation8], %s394
          %397 = dma.done %s392, 128
        $region56: #{tpu_custom_call.1} parent=51 // pred_fallthru
          _
      $region52: #{tpu_custom_call.1} parent=5 // pred_fallthru
        _
    $region6: #{tpu_custom_call.1} parent=1 // loop_footer
      %s20 = sadd.s32 1, %s16
    $region7: #{tpu_custom_call.1} parent=1 // loop_footer_branch
      %15 = sbr.rel target = $region3
    $region8: #{tpu_custom_call.1} parent=1 // loop_exit
      _
    %398 = vsyncpa [#allocation3], 1
    %s399 = scalar_lea.sflag [#allocation3], 1
    %400 = vsyncpa %s399, 1
    %401 = vsyncpa [#allocation6], 1
    %402 = vsyncpa [#allocation4], 1
    %s403 = scalar_lea.sflag [#allocation4], 1
    %404 = vsyncpa %s403, 1

</llo_original>
